<compile_context>
chip_gen: v7x
topology: tpu7x:2x2x1
jax: 0.10.0
libtpu: 0.0.40
codegen_flags: <defaults>
</compile_context>

<pallas_src>
import functools
import numpy as np
import jax
import jax.numpy as jnp
from jax.experimental import pallas as pl
from jax.experimental.pallas import tpu as pltpu


# ----------------------------------------------------------------------------
# Pallas kernel: gather-as-masked-matmul with per-(o,s)-block skipping
# ----------------------------------------------------------------------------
def _rotate_kernel(contrib_ref, src_ref, x_ref, o_ref, *, TS, x_resident):
    o_idx = pl.program_id(0)
    s_idx = pl.program_id(1)
    n_s = pl.num_programs(1)

    # Output block is resident across the s axis; zero it once per o block.
    @pl.when(s_idx == 0)
    def _():
        o_ref[...] = jnp.zeros_like(o_ref)

    # Skip (o, s) pairs whose source tile cannot contribute to this output tile.
    @pl.when(contrib_ref[o_idx * n_s + s_idx] != 0)
    def _():
        TO = src_ref.shape[1]
        # Fold the s-block offset into the (1, TO) source-index row so the
        # (TS, TO) work per step is just iota + compare + cast.
        local = src_ref[...] - s_idx * TS                         # (1, TO) int32
        base = jax.lax.broadcasted_iota(jnp.int32, (TS, TO), 0)   # loop shape only
        p_t = (local == base).astype(jnp.float32)                 # (TS, TO) one-hot
        if x_resident:
            start = pl.multiple_of(s_idx * TS, TS)
            xb = x_ref[:, pl.ds(start, TS)]                       # (NC, TS)
        else:
            xb = x_ref[...]                                       # (NC, TS)
        o_ref[...] += jnp.dot(xb, p_t, preferred_element_type=jnp.float32)


# ----------------------------------------------------------------------------
# Wrapper: index precompute, skip table, pallas_call
# ----------------------------------------------------------------------------
@functools.partial(jax.jit, static_argnames=("tile_o", "tile_s"))
def rotate_voxels(voxels, rot_mat, *, tile_o=512, tile_s=256):
    """Equivalent of RandomRotation3D._rotate_voxels (nearest, zeros, align_corners)."""
    v = jnp.asarray(voxels, jnp.float32)
    orig_ndim = v.ndim
    if orig_ndim == 3:
        v = v[None, None]
    elif orig_ndim == 4:
        v = v[None]
    assert v.ndim == 5, "expected 3D, 4D or 5D voxel tensor"
    N, C, D, H, W = v.shape
    V = D * H * W
    NC = N * C

    V128 = pl.cdiv(V, 128) * 128
    TO = max(128, (min(tile_o, V128) // 128) * 128)
    TS = max(128, (min(tile_s, V128) // 128) * 128)
    Vp_o = pl.cdiv(V, TO) * TO
    Vp_s = pl.cdiv(V, TS) * TS
    nO = Vp_o // TO
    nS = Vp_s // TS

    # ---- flatten voxels; pad the source axis up to a multiple of TS ----
    x = v.reshape(NC, V)
    if Vp_s > V:
        x = jnp.pad(x, ((0, 0), (0, Vp_s - V)))

    # ---- per-output nearest-neighbour source index (once, O(V) XLA) ----
    R = jnp.asarray(rot_mat, jnp.float32)
    flat = jnp.arange(Vp_o, dtype=jnp.int32)
    wk = flat % W
    hj = (flat // W) % H
    di = flat // (W * H)
    sd = 2.0 / (D - 1) if D > 1 else 0.0
    sh = 2.0 / (H - 1) if H > 1 else 0.0
    sw = 2.0 / (W - 1) if W > 1 else 0.0
    gd = di.astype(jnp.float32) * sd - 1.0       # linspace(-1, 1, D)[di]
    gh = hj.astype(jnp.float32) * sh - 1.0
    gw = wk.astype(jnp.float32) * sw - 1.0
    # rotated = [gd, gh, gw] @ R^T ; grid_sample reads (x, y, z) = channels 0,1,2
    xc = R[0, 0] * gd + R[0, 1] * gh + R[0, 2] * gw      # -> W axis
    yc = R[1, 0] * gd + R[1, 1] * gh + R[1, 2] * gw      # -> H axis
    zc = R[2, 0] * gd + R[2, 1] * gh + R[2, 2] * gw      # -> D axis
    # align_corners=True unnormalize + nearest (round-half-even, like nearbyint)
    ix = jnp.round((xc + 1.0) * 0.5 * (W - 1)).astype(jnp.int32)
    iy = jnp.round((yc + 1.0) * 0.5 * (H - 1)).astype(jnp.int32)
    iz = jnp.round((zc + 1.0) * 0.5 * (D - 1)).astype(jnp.int32)
    valid = ((flat < V) & (ix >= 0) & (ix < W) & (iy >= 0) & (iy < H)
             & (iz >= 0) & (iz < D))
    src = jnp.where(valid, iz * (H * W) + iy * W + ix, -1)         # (Vp_o,)

    # ---- per-(o_block, s_block) contribution table (scalar prefetch, SMEM) ----
    o_of = flat // TO
    s_of = jnp.clip(src // TS, 0, nS - 1)
    counts = jnp.zeros((nO, nS), jnp.int32).at[o_of, s_of].add(
        valid.astype(jnp.int32))
    contrib = (counts > 0).astype(jnp.int32).reshape(-1)           # (nO*nS,)

    # ---- x residency: keep the whole volume in VMEM when it fits ----
    x_bytes = 2 * NC * Vp_s * 4                # double-buffer worst case
    x_resident = x_bytes <= (18 << 20)         # safe under 32 MiB scoped VMEM (v7x incl.)
    if x_resident:
        x_spec = pl.BlockSpec((NC, Vp_s), lambda o, s, c: (0, 0))
    else:
        x_spec = pl.BlockSpec((NC, TS), lambda o, s, c: (0, s))

    kernel = functools.partial(_rotate_kernel, TS=TS, x_resident=x_resident)
    out = pl.pallas_call(
        kernel,
        out_shape=jax.ShapeDtypeStruct((NC, Vp_o), jnp.float32),
        grid_spec=pltpu.PrefetchScalarGridSpec(
            num_scalar_prefetch=1,
            grid=(nO, nS),
            in_specs=[
                pl.BlockSpec((1, TO), lambda o, s, c: (0, o)),     # src indices
                x_spec,                                            # voxels
            ],
            out_specs=pl.BlockSpec((NC, TO), lambda o, s, c: (0, o)),
        ),
        compiler_params=pltpu.CompilerParams(
            dimension_semantics=("parallel", "arbitrary"),
            vmem_limit_bytes=32 << 20),
    )(contrib, src.reshape(1, Vp_o), x)

    out = out[:, :V].reshape(N, C, D, H, W)
    if orig_ndim == 3:
        out = out[0, 0]
    elif orig_ndim == 4:
        out = out[0]
    return out


def sample_rotation_matrix(key, degrees, axes):
    """Traced analog of the torch.rand / np.random.choice sampling (no host sync)."""
    k_ang, k_ax = jax.random.split(key)
    angle = jax.random.uniform(k_ang, ()) * (2.0 * degrees) - degrees
    t = angle * (jnp.pi / 180.0)
    c, s = jnp.cos(t), jnp.sin(t)
    zero = jnp.zeros_like(c)
    one = jnp.ones_like(c)
    mat_by_axis = {
        'x': jnp.stack([one, zero, zero,
                        zero, c, -s,
                        zero, s, c]).reshape(3, 3),
        'y': jnp.stack([c, zero, s,
                        zero, one, zero,
                        -s, zero, c]).reshape(3, 3),
        'z': jnp.stack([c, -s, zero,
                        s, c, zero,
                        zero, zero, one]).reshape(3, 3),
    }
    branches = [lambda m=mat_by_axis[a]: m for a in axes]
    idx = jax.random.randint(k_ax, (), 0, len(axes))
    return jax.lax.switch(idx, branches)


class RandomRotation3D:
    """JAX/Pallas port of the PyTorch RandomRotation3D module."""

    def __init__(self, degrees: float = 180.0, axis=None):
        self.degrees = degrees
        self.axis = axis or ['z']

    def __call__(self, voxels, key):
        rot = sample_rotation_matrix(key, self.degrees, self.axis)
        return rotate_voxels(voxels, rot)


# ----------------------------------------------------------------------------
# Pure-JAX reference (same semantics as torch grid_sample nearest/zeros/align)
# ----------------------------------------------------------------------------
def reference_rotate(voxels, rot_mat):
    v = jnp.asarray(voxels, jnp.float32)
    orig_ndim = v.ndim
    if orig_ndim == 3:
        v = v[None, None]
    elif orig_ndim == 4:
        v = v[None]
    N, C, D, H, W = v.shape
    V = D * H * W
    di, hj, wk = jnp.meshgrid(jnp.arange(D), jnp.arange(H), jnp.arange(W),
                              indexing='ij')
    sd = 2.0 / (D - 1) if D > 1 else 0.0
    sh = 2.0 / (H - 1) if H > 1 else 0.0
    sw = 2.0 / (W - 1) if W > 1 else 0.0
    gd = di.astype(jnp.float32) * sd - 1.0
    gh = hj.astype(jnp.float32) * sh - 1.0
    gw = wk.astype(jnp.float32) * sw - 1.0
    R = jnp.asarray(rot_mat, jnp.float32)
    xc = R[0, 0] * gd + R[0, 1] * gh + R[0, 2] * gw
    yc = R[1, 0] * gd + R[1, 1] * gh + R[1, 2] * gw
    zc = R[2, 0] * gd + R[2, 1] * gh + R[2, 2] * gw
    ix = jnp.round((xc + 1.0) * 0.5 * (W - 1)).astype(jnp.int32)
    iy = jnp.round((yc + 1.0) * 0.5 * (H - 1)).astype(jnp.int32)
    iz = jnp.round((zc + 1.0) * 0.5 * (D - 1)).astype(jnp.int32)
    valid = ((ix >= 0) & (ix < W) & (iy >= 0) & (iy < H) & (iz >= 0) & (iz < D))
    src = jnp.clip(iz * (H * W) + iy * W + ix, 0, V - 1).reshape(-1)
    flat = v.reshape(N * C, V)
    out = jnp.where(valid.reshape(1, -1), flat[:, src], 0.0)
    out = out.reshape(N, C, D, H, W)
    if orig_ndim == 3:
        out = out[0, 0]
    elif orig_ndim == 4:
        out = out[0]
    return out


if __name__ == "__main__":
    key = jax.random.PRNGKey(0)
    k_data, k_rot = jax.random.split(key)

    # small voxel batch: (N=2, C=4, D=16, H=16, W=16)
    voxels = jax.random.uniform(k_data, (2, 4, 16, 16, 16), dtype=jnp.float32)

    module = RandomRotation3D(degrees=180.0, axis=['z'])
    rot = sample_rotation_matrix(k_rot, module.degrees, module.axis)

    out = jax.block_until_ready(rotate_voxels(voxels, rot))
    ref = jax.block_until_ready(reference_rotate(voxels, rot))

    assert out.shape == voxels.shape, (out.shape, voxels.shape)
    assert out.dtype == jnp.float32
    assert np.allclose(np.asarray(out), np.asarray(ref), atol=1e-5, rtol=1e-5)

    print("KERNEL_OK")
</pallas_src>

<mosaic_0001>
module attributes {stable_mosaic.version = 11 : i64} {
  func.func private @main(%arg0: i32) attributes {dimension_semantics = [#tpu.dimension_semantics<core_parallel>], iteration_bounds = array<i64: 2>, tpu.core_type = #tpu.core_type<sc_scalar_subcore>, window_params = []} {
    return
  }
}

module attributes {stable_mosaic.version = 11 : i64} {
  func.func private @main(%arg0: i32) attributes {dimension_semantics = [#tpu.dimension_semantics<core_parallel>], iteration_bounds = array<i64: 2>, tpu.core_type = #tpu.core_type<sc_scalar_subcore>, window_params = []} {
    return
  }
}

module attributes {stable_mosaic.version = 11 : i64} {
  func.func @_rotate_kernel(%arg0: i32, %arg1: i32, %arg2: memref<128xi32, #tpu.memory_space<smem>>, %arg3: memref<1x512xi32, #tpu.memory_space<vmem>>, %arg4: memref<8x4096xf32, #tpu.memory_space<vmem>>, %arg5: memref<8x512xf32, #tpu.memory_space<vmem>>) attributes {dimension_semantics = [#tpu.dimension_semantics<parallel>, #tpu.dimension_semantics<arbitrary>], iteration_bounds = array<i64: 8, 16>, scalar_prefetch = 1 : i64, scratch_operands = 0 : i64, tpu.core_type = #tpu.core_type<tc>, window_params = [{transform_indices = @transform_0, window_bounds = array<i64: 1, 512>}, {pipeline_mode = #tpu.pipeline_mode<synchronous>, transform_indices = @transform_1, window_bounds = array<i64: 8, 4096>}, {transform_indices = @transform_2, window_bounds = array<i64: 8, 512>}]} {
    %c0_i32 = arith.constant 0 : i32
    %0 = arith.cmpi eq, %arg1, %c0_i32 : i32
    %1 = arith.extui %0 : i1 to i32
    %c0_i32_0 = arith.constant 0 : i32
    %2 = arith.cmpi ne, %1, %c0_i32_0 : i32
    scf.if %2 {
      %cst = arith.constant 0.000000e+00 : f32
      %10 = vector.broadcast %cst : f32 to vector<8x512xf32>
      %c0 = arith.constant 0 : index
      %c0_3 = arith.constant 0 : index
      %11 = vector.load %arg5[%c0, %c0_3] : memref<8x512xf32, #tpu.memory_space<vmem>>, vector<8x512xf32>
      tpu.vector_store %arg5[%c0, %c0_3], %10 {strides = array<i32>} : memref<8x512xf32, #tpu.memory_space<vmem>>, vector<8x512xf32>,
    } else {
    }
    %c16_i32 = arith.constant 16 : i32
    %3 = arith.muli %arg0, %c16_i32 : i32
    %4 = arith.addi %3, %arg1 : i32
    %5 = arith.index_cast %4 : i32 to index
    %6 = memref.load %arg2[%5] : memref<128xi32, #tpu.memory_space<smem>>
    %c0_i32_1 = arith.constant 0 : i32
    %7 = arith.cmpi ne, %6, %c0_i32_1 : i32
    %8 = arith.extui %7 : i1 to i32
    %c0_i32_2 = arith.constant 0 : i32
    %9 = arith.cmpi ne, %8, %c0_i32_2 : i32
    scf.if %9 {
      %c0 = arith.constant 0 : index
      %c0_3 = arith.constant 0 : index
      %10 = vector.load %arg3[%c0, %c0_3] : memref<1x512xi32, #tpu.memory_space<vmem>>, vector<1x512xi32>
      %c256_i32 = arith.constant 256 : i32
      %11 = arith.muli %arg1, %c256_i32 : i32
      %12 = vector.broadcast %11 : i32 to vector<1x512xi32>
      %13 = arith.subi %10, %12 : vector<1x512xi32>
      %14 = tpu.iota {dimensions = array<i32: 0>} : vector<256x512xi32>
      %15 = vector.broadcast %13 : vector<1x512xi32> to vector<256x512xi32>
      %16 = arith.cmpi eq, %15, %14 : vector<256x512xi32>
      %17 = arith.extui %16 : vector<256x512xi1> to vector<256x512xi32>
      %18 = arith.sitofp %17 : vector<256x512xi32> to vector<256x512xf32>
      %c256_i32_4 = arith.constant 256 : i32
      %19 = arith.muli %arg1, %c256_i32_4 : i32
      %20 = tpu.assume_multiple %19, 256 : i32
      %c0_5 = arith.constant 0 : index
      %21 = arith.index_cast %20 : i32 to index
      %22 = vector.load %arg4[%c0_5, %21] : memref<8x4096xf32, #tpu.memory_space<vmem>>, vector<8x256xf32>
      %c0_6 = arith.constant 0 : index
      %c0_7 = arith.constant 0 : index
      %23 = vector.load %arg5[%c0_6, %c0_7] : memref<8x512xf32, #tpu.memory_space<vmem>>, vector<8x512xf32>
      %cst = arith.constant dense<0.000000e+00> : vector<8x512xf32>
      %24 = tpu.matmul %22, %18, %cst {dimension_numbers = #tpu.dot_dimension_numbers<[1], [0], [0], [1], [0, 0, 1, 1], [], []>} : vector<8x256xf32>, vector<256x512xf32>, vector<8x512xf32> -> vector<8x512xf32>
      %25 = arith.addf %23, %24 : vector<8x512xf32>
      %c0_8 = arith.constant 0 : index
      %c0_9 = arith.constant 0 : index
      %26 = vector.load %arg5[%c0_8, %c0_9] : memref<8x512xf32, #tpu.memory_space<vmem>>, vector<8x512xf32>
      tpu.vector_store %arg5[%c0_8, %c0_9], %25 {strides = array<i32>} : memref<8x512xf32, #tpu.memory_space<vmem>>, vector<8x512xf32>,
    } else {
    }
    return
  }
  func.func @transform_0(%arg0: i32, %arg1: i32, %arg2: memref<128xi32, #tpu.memory_space<smem>>) -> (i32, i32) {
    %c0_i32 = arith.constant 0 : i32
    %c0_i32_0 = arith.constant 0 : i32
    return %c0_i32, %arg0 : i32, i32
  }
  func.func @transform_1(%arg0: i32, %arg1: i32, %arg2: memref<128xi32, #tpu.memory_space<smem>>) -> (i32, i32) {
    %c0_i32 = arith.constant 0 : i32
    %c0_i32_0 = arith.constant 0 : i32
    %c0_i32_1 = arith.constant 0 : i32
    return %c0_i32, %c0_i32_0 : i32, i32
  }
  func.func @transform_2(%arg0: i32, %arg1: i32, %arg2: memref<128xi32, #tpu.memory_space<smem>>) -> (i32, i32) {
    %c0_i32 = arith.constant 0 : i32
    %c0_i32_0 = arith.constant 0 : i32
    return %c0_i32, %arg0 : i32, i32
  }
}

</mosaic_0001>

<llo_original>
// kernel: rotate_voxels.1
$region0: #{rotate_voxels.1}
  #allocation0 [shape = 'u32[]', space=smem, size = 0x4, offset = 0x4, fixed_abs, tag = 'smem constant byte address 0x4 - core index']
  #allocation1 [shape = 'u32[144,128]{1,0:T(1,128)}', space=vmem, size = 0x12000, scoped, tag = 'internal scratch']
  #allocation2 [shape = 's32[1]{0}', space=sflag, size = 0x4, scoped, tag = 'scoped memory for rotate_voxels.1']
  #allocation3 [shape = 'u8[512]{0}', space=smem, size = 0x200, scoped, tag = 'prefetched SMEM operand 0']
  %s0 = inlined_call_operand.vmem [shape: s32[128], index: 0, kind: input, shape index: {}]
  %s1 = inlined_call_operand.vmem [shape: s32[1,4096], index: 1, kind: input, shape index: {}]
  %s2 = inlined_call_operand.vmem [shape: f32[8,4096], index: 2, kind: input, shape index: {}]
  %s3 = inlined_call_operand.vmem [shape: f32[8,4096], index: 3, kind: output, shape index: {}]
  %s4 = sld [smem:[#allocation0]]
  $region49: #{rotate_voxels.1} parent=0
    _
  %s6 = ssub.s32 1, %s4
  %s7 = scalar_select 0, %s6, %s4
  %s8 = sshll.u32 %s0, 4
  %s9 = int_to_ptr.vmem [resolvable:$true] %s8
  %11 = dma.vmem_to_smem %s9, 16, [#allocation3], [#allocation2]
  %12 = dma.done [#allocation2], 16
  %13 = sfence
  loop: start=0, step=1, limit=130
  $region2: #{rotate_voxels.1} parent=0 // loop_pre_header
    _
  $region3: #{rotate_voxels.1} parent=0 // loop_header
    %s15 = sphi 0, %s19
    %p16 = scmp.ge.s32.totalorder %s15, 130
    %s22 = sphi 0, %s34
    %s23 = sphi 0, %s30
    %s24 = sphi 0, %s22
    %s25 = sphi 0, %s23
    %s26 = sphi 0, %s24
    %s27 = sphi 0, %s25
    %s37 = sphi 0, %s39
    %s40 = sphi 0, %s37
    %s41 = sphi 0, %s40
    %s57 = sphi 0, %s41
    %s61 = sphi 0, %s61
    %s63 = sphi 0, %s61
    %s64 = sphi 0, %s63
    %s78 = sphi 0, %s64
    %s84 = sphi 0, %s86
    %s87 = sphi 0, %s84
    %s88 = sphi 0, %s87
    %s104 = sphi 0, %s88
  $region4: #{rotate_voxels.1} parent=0 // loop_header_branch
    %18 = sbr.rel (%p16) target = $region8
  $region5: #{rotate_voxels.1} parent=0 // loop_body
    %s20 = ssub.s32 %s15, 1
    %s21 = ssub.s32 %s15, 2
    %s28 = sadd.s32 1, %s23
    %p29 = scmp.ge.s32.totalorder %s28, 16
    %s30 = scalar_select %p29, 0, %s28
    %s31 = sadd.s32 1, %s22
    %s32 = scalar_select %p29, %s31, %s22
    %p33 = scmp.ge.s32.totalorder %s32, 8
    %s34 = scalar_select %p33, 0, %s32
    %s35 = ssub.s32 %s22, %s34
    %p36 = scmp.eq.s32.totalorder %s35, 0
    %s38 = sadd.s32 %s37, 1
    %s39 = scalar_select %p36, %s37, %s38
    %p42 = pneg %p36
    %p43 = scmp.eq.s32.totalorder %s15, 127
    %p44 = por %p42, %p43
    %p45 = scmp.ne.s32.totalorder %s37, %s40
    %p46 = scmp.eq.s32.totalorder %s15, 0
    %p47 = por %p45, %p46
    %p48 = scmp.ne.s32.totalorder %s37, %s40
    %p49 = scmp.eq.s32.totalorder %s20, 127
    %p50 = por %p48, %p49
    %p51 = scmp.ne.s32.totalorder %s40, %s41
    %p52 = scmp.eq.s32.totalorder %s20, 0
    %p53 = por %p51, %p52
    %p54 = scmp.ne.s32.totalorder %s40, %s41
    %p55 = scmp.eq.s32.totalorder %s21, 127
    %p56 = por %p54, %p55
    %p58 = scmp.ne.s32.totalorder %s41, %s57
    %p59 = scmp.eq.s32.totalorder %s21, 0
    %p60 = por %p58, %p59
    %s62 = sadd.s32 %s61, 1
    %p65 = scmp.eq.s32.totalorder %s15, 127
    %p66 = scmp.ne.s32.totalorder %s61, %s63
    %p67 = scmp.eq.s32.totalorder %s15, 0
    %p68 = por %p66, %p67
    %p69 = scmp.ne.s32.totalorder %s61, %s63
    %p70 = scmp.eq.s32.totalorder %s20, 127
    %p71 = por %p69, %p70
    %p72 = scmp.ne.s32.totalorder %s63, %s64
    %p73 = scmp.eq.s32.totalorder %s20, 0
    %p74 = por %p72, %p73
    %p75 = scmp.ne.s32.totalorder %s63, %s64
    %p76 = scmp.eq.s32.totalorder %s21, 127
    %p77 = por %p75, %p76
    %p79 = scmp.ne.s32.totalorder %s64, %s78
    %p80 = scmp.eq.s32.totalorder %s21, 0
    %p81 = por %p79, %p80
    %s82 = ssub.s32 %s22, %s34
    %p83 = scmp.eq.s32.totalorder %s82, 0
    %s85 = sadd.s32 %s84, 1
    %s86 = scalar_select %p83, %s84, %s85
    %p89 = pneg %p83
    %p90 = scmp.eq.s32.totalorder %s15, 127
    %p91 = por %p89, %p90
    %p92 = scmp.ne.s32.totalorder %s84, %s87
    %p93 = scmp.eq.s32.totalorder %s15, 0
    %p94 = por %p92, %p93
    %p95 = scmp.ne.s32.totalorder %s84, %s87
    %p96 = scmp.eq.s32.totalorder %s20, 127
    %p97 = por %p95, %p96
    %p98 = scmp.ne.s32.totalorder %s87, %s88
    %p99 = scmp.eq.s32.totalorder %s20, 0
    %p100 = por %p98, %p99
    %p101 = scmp.ne.s32.totalorder %s87, %s88
    %p102 = scmp.eq.s32.totalorder %s21, 127
    %p103 = por %p101, %p102
    %p105 = scmp.ne.s32.totalorder %s88, %s104
    %p106 = scmp.eq.s32.totalorder %s21, 0
    %p107 = por %p105, %p106
    %p108 = scmp.le.s32.totalorder 1, %s15
    %p109 = scmp.lt.s32.totalorder %s15, 129
    %p110 = pnand %p108, %p109
    %p111 = pneg %p110
    // Predicated region
    $region9: #{rotate_voxels.1} parent=5 // pred_check
      _
    $region10: #{rotate_voxels.1} parent=5 // pred_check_branch
      %113 = sbr.rel (%p110) target = $region12
    $region11: #{rotate_voxels.1} parent=5 // pred_region
      %s114 = ssub.s32 %s15, 1
      // Predicated region
      $region13: #{rotate_voxels.1} parent=11 // pred_check
        %p115 = pneg %p74
      $region14: #{rotate_voxels.1} parent=11 // pred_check_branch
        %117 = sbr.rel (%p115) target = $region16
      $region15: #{rotate_voxels.1} parent=11 // pred_region
        _
      $region16: #{rotate_voxels.1} parent=11 // pred_fallthru
        _
    $region12: #{rotate_voxels.1} parent=5 // pred_fallthru
      _
    %p118 = scmp.lt.s32.totalorder %s15, 128
    // Predicated region
    $region17: #{rotate_voxels.1} parent=5 // pred_check
      %p119 = pneg %p118
    $region18: #{rotate_voxels.1} parent=5 // pred_check_branch
      %121 = sbr.rel (%p119) target = $region20
    $region19: #{rotate_voxels.1} parent=5 // pred_region
      // Predicated region
      $region21: #{rotate_voxels.1} parent=19 // pred_check
        %p122 = pneg %p47
      $region22: #{rotate_voxels.1} parent=19 // pred_check_branch
        %124 = sbr.rel (%p122) target = $region24
      $region23: #{rotate_voxels.1} parent=19 // pred_region
        %s125 = smul.u32 4, %s22
        %p126 = scmp.lt.s32.totalorder %s125, 31
        %s127 = scalar_select %p126, %s125, 31
        %s128 = scalar_lea.vmem %s1, %s127
        %s129 = smul.u32 4, %s22
      $region24: #{rotate_voxels.1} parent=19 // pred_fallthru
        _
    $region20: #{rotate_voxels.1} parent=5 // pred_fallthru
      _
    %p130 = scmp.le.s32.totalorder 1, %s15
    %p131 = scmp.lt.s32.totalorder %s15, 129
    %p132 = pnand %p130, %p131
    %p133 = pneg %p132
    // Predicated region
    $region25: #{rotate_voxels.1} parent=5 // pred_check
      _
    $region26: #{rotate_voxels.1} parent=5 // pred_check_branch
      %135 = sbr.rel (%p132) target = $region28
    $region27: #{rotate_voxels.1} parent=5 // pred_region
      %s136 = ssub.s32 %s15, 1
      %s137 = smul.u32 4, %s24
      %p138 = scmp.lt.s32.totalorder %s137, 31
      %s139 = scalar_select %p138, %s137, 31
      %s140 = scalar_lea.vmem %s1, %s139
      %p141 = pneg %p53
      %p142 = pneg %p50
      %p143 = pneg %p74
      %p144 = pneg %p71
      %p145 = pneg %p100
      %p146 = pneg %p97
      %s147 = smul.u32 4, %s24
      %p148 = scmp.lt.s32.totalorder %s147, 31
      %s149 = scalar_select %p148, %s147, 31
      %s150 = smul.addr %s149, 8
      %s151 = scalar_lea.vmem %s3, %s150
      %s152 = smul.u32 4, %s24
      %p153 = scmp.lt.s32.totalorder %s152, 31
      %s154 = scalar_select %p153, %s152, 31
      %s155 = scalar_lea.vmem %s1, %s154
      %s156 = smul.u32 4, %s24
      %s157 = smul.u32 4, %s24
      %p158 = scmp.lt.s32.totalorder %s157, 31
      %s159 = scalar_select %p158, %s157, 31
      %s160 = smul.addr %s159, 8
      %s161 = scalar_lea.vmem %s3, %s160
      %s162 = smul.u32 4, %s24
      %p163 = scmp.eq.s32.totalorder %s25, 0
      // Predicated region
      $region29: #{rotate_voxels.1} parent=27 // pred_check
        %p164 = pneg %p163
      $region30: #{rotate_voxels.1} parent=27 // pred_check_branch
        %166 = sbr.rel (%p164) target = $region32
      $region31: #{rotate_voxels.1} parent=27 // pred_region
        %167 = vst [vmem:[%s161] sm:$0xff] 0.0
        %168 = vst [vmem:[%s161 + $0x8] sm:$0xff] 0.0
        %169 = vst [vmem:[%s161 + $0x10] sm:$0xff] 0.0
        %170 = vst [vmem:[%s161 + $0x18] sm:$0xff] 0.0
      $region32: #{rotate_voxels.1} parent=27 // pred_fallthru
        _
      %s171 = smul.u32 %s24, 16
      %s172 = sadd.s32 %s171, %s25
      %s173 = sld [smem:[#allocation3 + %s172]]
      %p174 = scmp.ne.s32.totalorder %s173, 0
      // Predicated region
      $region33: #{rotate_voxels.1} parent=27 // pred_check
        %p175 = pneg %p174
      $region34: #{rotate_voxels.1} parent=27 // pred_check_branch
        %177 = sbr.rel (%p175) target = $region36
      $region35: #{rotate_voxels.1} parent=27 // pred_region
        %v178 = vld [vmem:[%s155] sm:$0xf]
        %s179 = smul.u32 %s25, 256
        %v180 = vstv %s179
        %v181 = vsub.s32 %v178, %v180
        %v182 = vlaneseq
        %v183 = vshrl.u32 %v182, 7
        %v184 = vadd.s32 %v183, 8
        %v185 = vadd.s32 %v183, 16
        %v186 = vadd.s32 %v183, 24
        %v187 = vadd.s32 %v183, 32
        %v188 = vadd.s32 %v183, 40
        %v189 = vadd.s32 %v183, 48
        %v190 = vadd.s32 %v183, 56
        %v191 = vadd.s32 %v183, 64
        %v192 = vadd.s32 %v183, 72
        %v193 = vadd.s32 %v183, 80
        %v194 = vadd.s32 %v183, 88
        %v195 = vadd.s32 %v183, 96
        %v196 = vadd.s32 %v183, 104
        %v197 = vadd.s32 %v183, 112
        %v198 = vadd.s32 %v183, 120
        %v199 = vadd.s32 %v183, 128
        %v200 = vadd.s32 %v183, 136
        %v201 = vadd.s32 %v183, 144
        %v202 = vadd.s32 %v183, 152
        %v203 = vadd.s32 %v183, 160
        %v204 = vadd.s32 %v183, 168
        %v205 = vadd.s32 %v183, 176
        %v206 = vadd.s32 %v183, 184
        %v207 = vadd.s32 %v183, 192
        %v208 = vadd.s32 %v183, 200
        %v209 = vadd.s32 %v183, 208
        %v210 = vadd.s32 %v183, 216
        %v211 = vadd.s32 %v183, 224
        %v212 = vadd.s32 %v183, 232
        %v213 = vadd.s32 %v183, 240
        %v214 = vadd.s32 %v183, 248
        %v215 = vlaneseq
        %v216 = vshrl.u32 %v215, 7
        %v217 = vsub.s32 0, %v216
        %v218 = vrot.slane %v181, %v217
        %v219 = vlaneseq
        %v220 = vshrl.u32 %v219, 7
        %v221 = vsub.s32 1, %v220
        %v222 = vrot.slane %v181, %v221
        %v223 = vlaneseq
        %v224 = vshrl.u32 %v223, 7
        %v225 = vsub.s32 2, %v224
        %v226 = vrot.slane %v181, %v225
        %v227 = vlaneseq
        %v228 = vshrl.u32 %v227, 7
        %v229 = vsub.s32 3, %v228
        %v230 = vrot.slane %v181, %v229
        %vm231 = vcmp.eq.s32.totalorder %v218, %v183
        %vm232 = vcmp.eq.s32.totalorder %v222, %v183
        %vm233 = vcmp.eq.s32.totalorder %v226, %v183
        %vm234 = vcmp.eq.s32.totalorder %v230, %v183
        %vm235 = vcmp.eq.s32.totalorder %v218, %v184
        %vm236 = vcmp.eq.s32.totalorder %v222, %v184
        %vm237 = vcmp.eq.s32.totalorder %v226, %v184
        %vm238 = vcmp.eq.s32.totalorder %v230, %v184
        %vm239 = vcmp.eq.s32.totalorder %v218, %v185
        %vm240 = vcmp.eq.s32.totalorder %v222, %v185
        %vm241 = vcmp.eq.s32.totalorder %v226, %v185
        %vm242 = vcmp.eq.s32.totalorder %v230, %v185
        %vm243 = vcmp.eq.s32.totalorder %v218, %v186
        %vm244 = vcmp.eq.s32.totalorder %v222, %v186
        %vm245 = vcmp.eq.s32.totalorder %v226, %v186
        %vm246 = vcmp.eq.s32.totalorder %v230, %v186
        %vm247 = vcmp.eq.s32.totalorder %v218, %v187
        %vm248 = vcmp.eq.s32.totalorder %v222, %v187
        %vm249 = vcmp.eq.s32.totalorder %v226, %v187
        %vm250 = vcmp.eq.s32.totalorder %v230, %v187
        %vm251 = vcmp.eq.s32.totalorder %v218, %v188
        %vm252 = vcmp.eq.s32.totalorder %v222, %v188
        %vm253 = vcmp.eq.s32.totalorder %v226, %v188
        %vm254 = vcmp.eq.s32.totalorder %v230, %v188
        %vm255 = vcmp.eq.s32.totalorder %v218, %v189
        %vm256 = vcmp.eq.s32.totalorder %v222, %v189
        %vm257 = vcmp.eq.s32.totalorder %v226, %v189
        %vm258 = vcmp.eq.s32.totalorder %v230, %v189
        %vm259 = vcmp.eq.s32.totalorder %v218, %v190
        %vm260 = vcmp.eq.s32.totalorder %v222, %v190
        %vm261 = vcmp.eq.s32.totalorder %v226, %v190
        %vm262 = vcmp.eq.s32.totalorder %v230, %v190
        %vm263 = vcmp.eq.s32.totalorder %v218, %v191
        %vm264 = vcmp.eq.s32.totalorder %v222, %v191
        %vm265 = vcmp.eq.s32.totalorder %v226, %v191
        %vm266 = vcmp.eq.s32.totalorder %v230, %v191
        %vm267 = vcmp.eq.s32.totalorder %v218, %v192
        %vm268 = vcmp.eq.s32.totalorder %v222, %v192
        %vm269 = vcmp.eq.s32.totalorder %v226, %v192
        %vm270 = vcmp.eq.s32.totalorder %v230, %v192
        %vm271 = vcmp.eq.s32.totalorder %v218, %v193
        %vm272 = vcmp.eq.s32.totalorder %v222, %v193
        %vm273 = vcmp.eq.s32.totalorder %v226, %v193
        %vm274 = vcmp.eq.s32.totalorder %v230, %v193
        %vm275 = vcmp.eq.s32.totalorder %v218, %v194
        %vm276 = vcmp.eq.s32.totalorder %v222, %v194
        %vm277 = vcmp.eq.s32.totalorder %v226, %v194
        %vm278 = vcmp.eq.s32.totalorder %v230, %v194
        %vm279 = vcmp.eq.s32.totalorder %v218, %v195
        %vm280 = vcmp.eq.s32.totalorder %v222, %v195
        %vm281 = vcmp.eq.s32.totalorder %v226, %v195
        %vm282 = vcmp.eq.s32.totalorder %v230, %v195
        %vm283 = vcmp.eq.s32.totalorder %v218, %v196
        %vm284 = vcmp.eq.s32.totalorder %v222, %v196
        %vm285 = vcmp.eq.s32.totalorder %v226, %v196
        %vm286 = vcmp.eq.s32.totalorder %v230, %v196
        %vm287 = vcmp.eq.s32.totalorder %v218, %v197
        %vm288 = vcmp.eq.s32.totalorder %v222, %v197
        %vm289 = vcmp.eq.s32.totalorder %v226, %v197
        %vm290 = vcmp.eq.s32.totalorder %v230, %v197
        %vm291 = vcmp.eq.s32.totalorder %v218, %v198
        %vm292 = vcmp.eq.s32.totalorder %v222, %v198
        %vm293 = vcmp.eq.s32.totalorder %v226, %v198
        %vm294 = vcmp.eq.s32.totalorder %v230, %v198
        %vm295 = vcmp.eq.s32.totalorder %v218, %v199
        %vm296 = vcmp.eq.s32.totalorder %v222, %v199
        %vm297 = vcmp.eq.s32.totalorder %v226, %v199
        %vm298 = vcmp.eq.s32.totalorder %v230, %v199
        %vm299 = vcmp.eq.s32.totalorder %v218, %v200
        %vm300 = vcmp.eq.s32.totalorder %v222, %v200
        %vm301 = vcmp.eq.s32.totalorder %v226, %v200
        %vm302 = vcmp.eq.s32.totalorder %v230, %v200
        %vm303 = vcmp.eq.s32.totalorder %v218, %v201
        %vm304 = vcmp.eq.s32.totalorder %v222, %v201
        %vm305 = vcmp.eq.s32.totalorder %v226, %v201
        %vm306 = vcmp.eq.s32.totalorder %v230, %v201
        %vm307 = vcmp.eq.s32.totalorder %v218, %v202
        %vm308 = vcmp.eq.s32.totalorder %v222, %v202
        %vm309 = vcmp.eq.s32.totalorder %v226, %v202
        %vm310 = vcmp.eq.s32.totalorder %v230, %v202
        %vm311 = vcmp.eq.s32.totalorder %v218, %v203
        %vm312 = vcmp.eq.s32.totalorder %v222, %v203
        %vm313 = vcmp.eq.s32.totalorder %v226, %v203
        %vm314 = vcmp.eq.s32.totalorder %v230, %v203
        %vm315 = vcmp.eq.s32.totalorder %v218, %v204
        %vm316 = vcmp.eq.s32.totalorder %v222, %v204
        %vm317 = vcmp.eq.s32.totalorder %v226, %v204
        %vm318 = vcmp.eq.s32.totalorder %v230, %v204
        %vm319 = vcmp.eq.s32.totalorder %v218, %v205
        %vm320 = vcmp.eq.s32.totalorder %v222, %v205
        %vm321 = vcmp.eq.s32.totalorder %v226, %v205
        %vm322 = vcmp.eq.s32.totalorder %v230, %v205
        %vm323 = vcmp.eq.s32.totalorder %v218, %v206
        %vm324 = vcmp.eq.s32.totalorder %v222, %v206
        %vm325 = vcmp.eq.s32.totalorder %v226, %v206
        %vm326 = vcmp.eq.s32.totalorder %v230, %v206
        %vm327 = vcmp.eq.s32.totalorder %v218, %v207
        %vm328 = vcmp.eq.s32.totalorder %v222, %v207
        %vm329 = vcmp.eq.s32.totalorder %v226, %v207
        %vm330 = vcmp.eq.s32.totalorder %v230, %v207
        %vm331 = vcmp.eq.s32.totalorder %v218, %v208
        %vm332 = vcmp.eq.s32.totalorder %v222, %v208
        %vm333 = vcmp.eq.s32.totalorder %v226, %v208
        %vm334 = vcmp.eq.s32.totalorder %v230, %v208
        %vm335 = vcmp.eq.s32.totalorder %v218, %v209
        %vm336 = vcmp.eq.s32.totalorder %v222, %v209
        %vm337 = vcmp.eq.s32.totalorder %v226, %v209
        %vm338 = vcmp.eq.s32.totalorder %v230, %v209
        %vm339 = vcmp.eq.s32.totalorder %v218, %v210
        %vm340 = vcmp.eq.s32.totalorder %v222, %v210
        %vm341 = vcmp.eq.s32.totalorder %v226, %v210
        %vm342 = vcmp.eq.s32.totalorder %v230, %v210
        %vm343 = vcmp.eq.s32.totalorder %v218, %v211
        %vm344 = vcmp.eq.s32.totalorder %v222, %v211
        %vm345 = vcmp.eq.s32.totalorder %v226, %v211
        %vm346 = vcmp.eq.s32.totalorder %v230, %v211
        %vm347 = vcmp.eq.s32.totalorder %v218, %v212
        %vm348 = vcmp.eq.s32.totalorder %v222, %v212
        %vm349 = vcmp.eq.s32.totalorder %v226, %v212
        %vm350 = vcmp.eq.s32.totalorder %v230, %v212
        %vm351 = vcmp.eq.s32.totalorder %v218, %v213
        %vm352 = vcmp.eq.s32.totalorder %v222, %v213
        %vm353 = vcmp.eq.s32.totalorder %v226, %v213
        %vm354 = vcmp.eq.s32.totalorder %v230, %v213
        %vm355 = vcmp.eq.s32.totalorder %v218, %v214
        %vm356 = vcmp.eq.s32.totalorder %v222, %v214
        %vm357 = vcmp.eq.s32.totalorder %v226, %v214
        %vm358 = vcmp.eq.s32.totalorder %v230, %v214
        %v359 = vsel %vm231, 1, 0
        %v360 = vsel %vm232, 1, 0
        %v361 = vsel %vm233, 1, 0
        %v362 = vsel %vm234, 1, 0
        %v363 = vsel %vm235, 1, 0
        %v364 = vsel %vm236, 1, 0
        %v365 = vsel %vm237, 1, 0
        %v366 = vsel %vm238, 1, 0
        %v367 = vsel %vm239, 1, 0
        %v368 = vsel %vm240, 1, 0
        %v369 = vsel %vm241, 1, 0
        %v370 = vsel %vm242, 1, 0
        %v371 = vsel %vm243, 1, 0
        %v372 = vsel %vm244, 1, 0
        %v373 = vsel %vm245, 1, 0
        %v374 = vsel %vm246, 1, 0
        %v375 = vsel %vm247, 1, 0
        %v376 = vsel %vm248, 1, 0
        %v377 = vsel %vm249, 1, 0
        %v378 = vsel %vm250, 1, 0
        %v379 = vsel %vm251, 1, 0
        %v380 = vsel %vm252, 1, 0
        %v381 = vsel %vm253, 1, 0
        %v382 = vsel %vm254, 1, 0
        %v383 = vsel %vm255, 1, 0
        %v384 = vsel %vm256, 1, 0
        %v385 = vsel %vm257, 1, 0
        %v386 = vsel %vm258, 1, 0
        %v387 = vsel %vm259, 1, 0
        %v388 = vsel %vm260, 1, 0
        %v389 = vsel %vm261, 1, 0
        %v390 = vsel %vm262, 1, 0
        %v391 = vsel %vm263, 1, 0
        %v392 = vsel %vm264, 1, 0
        %v393 = vsel %vm265, 1, 0
        %v394 = vsel %vm266, 1, 0
        %v395 = vsel %vm267, 1, 0
        %v396 = vsel %vm268, 1, 0
        %v397 = vsel %vm269, 1, 0
        %v398 = vsel %vm270, 1, 0
        %v399 = vsel %vm271, 1, 0
        %v400 = vsel %vm272, 1, 0
        %v401 = vsel %vm273, 1, 0
        %v402 = vsel %vm274, 1, 0
        %v403 = vsel %vm275, 1, 0
        %v404 = vsel %vm276, 1, 0
        %v405 = vsel %vm277, 1, 0
        %v406 = vsel %vm278, 1, 0
        %v407 = vsel %vm279, 1, 0
        %v408 = vsel %vm280, 1, 0
        %v409 = vsel %vm281, 1, 0
        %v410 = vsel %vm282, 1, 0
        %v411 = vsel %vm283, 1, 0
        %v412 = vsel %vm284, 1, 0
        %v413 = vsel %vm285, 1, 0
        %v414 = vsel %vm286, 1, 0
        %v415 = vsel %vm287, 1, 0
        %v416 = vsel %vm288, 1, 0
        %v417 = vsel %vm289, 1, 0
        %v418 = vsel %vm290, 1, 0
        %v419 = vsel %vm291, 1, 0
        %v420 = vsel %vm292, 1, 0
        %v421 = vsel %vm293, 1, 0
        %v422 = vsel %vm294, 1, 0
        %v423 = vsel %vm295, 1, 0
        %v424 = vsel %vm296, 1, 0
        %v425 = vsel %vm297, 1, 0
        %v426 = vsel %vm298, 1, 0
        %v427 = vsel %vm299, 1, 0
        %v428 = vsel %vm300, 1, 0
        %v429 = vsel %vm301, 1, 0
        %v430 = vsel %vm302, 1, 0
        %v431 = vsel %vm303, 1, 0
        %v432 = vsel %vm304, 1, 0
        %v433 = vsel %vm305, 1, 0
        %v434 = vsel %vm306, 1, 0
        %v435 = vsel %vm307, 1, 0
        %v436 = vsel %vm308, 1, 0
        %v437 = vsel %vm309, 1, 0
        %v438 = vsel %vm310, 1, 0
        %v439 = vsel %vm311, 1, 0
        %v440 = vsel %vm312, 1, 0
        %v441 = vsel %vm313, 1, 0
        %v442 = vsel %vm314, 1, 0
        %v443 = vsel %vm315, 1, 0
        %v444 = vsel %vm316, 1, 0
        %v445 = vsel %vm317, 1, 0
        %v446 = vsel %vm318, 1, 0
        %v447 = vsel %vm319, 1, 0
        %v448 = vsel %vm320, 1, 0
        %v449 = vsel %vm321, 1, 0
        %v450 = vsel %vm322, 1, 0
        %v451 = vsel %vm323, 1, 0
        %v452 = vsel %vm324, 1, 0
        %v453 = vsel %vm325, 1, 0
        %v454 = vsel %vm326, 1, 0
        %v455 = vsel %vm327, 1, 0
        %v456 = vsel %vm328, 1, 0
        %v457 = vsel %vm329, 1, 0
        %v458 = vsel %vm330, 1, 0
        %v459 = vsel %vm331, 1, 0
        %v460 = vsel %vm332, 1, 0
        %v461 = vsel %vm333, 1, 0
        %v462 = vsel %vm334, 1, 0
        %v463 = vsel %vm335, 1, 0
        %v464 = vsel %vm336, 1, 0
        %v465 = vsel %vm337, 1, 0
        %v466 = vsel %vm338, 1, 0
        %v467 = vsel %vm339, 1, 0
        %v468 = vsel %vm340, 1, 0
        %v469 = vsel %vm341, 1, 0
        %v470 = vsel %vm342, 1, 0
        %v471 = vsel %vm343, 1, 0
        %v472 = vsel %vm344, 1, 0
        %v473 = vsel %vm345, 1, 0
        %v474 = vsel %vm346, 1, 0
        %v475 = vsel %vm347, 1, 0
        %v476 = vsel %vm348, 1, 0
        %v477 = vsel %vm349, 1, 0
        %v478 = vsel %vm350, 1, 0
        %v479 = vsel %vm351, 1, 0
        %v480 = vsel %vm352, 1, 0
        %v481 = vsel %vm353, 1, 0
        %v482 = vsel %vm354, 1, 0
        %v483 = vsel %vm355, 1, 0
        %v484 = vsel %vm356, 1, 0
        %v485 = vsel %vm357, 1, 0
        %v486 = vsel %vm358, 1, 0
        %v487 = vcvt.s32.f32 %v359
        %v488 = vcvt.s32.f32 %v360
        %v489 = vcvt.s32.f32 %v361
        %v490 = vcvt.s32.f32 %v362
        %v491 = vcvt.s32.f32 %v363
        %v492 = vcvt.s32.f32 %v364
        %v493 = vcvt.s32.f32 %v365
        %v494 = vcvt.s32.f32 %v366
        %v495 = vcvt.s32.f32 %v367
        %v496 = vcvt.s32.f32 %v368
        %v497 = vcvt.s32.f32 %v369
        %v498 = vcvt.s32.f32 %v370
        %v499 = vcvt.s32.f32 %v371
        %v500 = vcvt.s32.f32 %v372
        %v501 = vcvt.s32.f32 %v373
        %v502 = vcvt.s32.f32 %v374
        %v503 = vcvt.s32.f32 %v375
        %v504 = vcvt.s32.f32 %v376
        %v505 = vcvt.s32.f32 %v377
        %v506 = vcvt.s32.f32 %v378
        %v507 = vcvt.s32.f32 %v379
        %v508 = vcvt.s32.f32 %v380
        %v509 = vcvt.s32.f32 %v381
        %v510 = vcvt.s32.f32 %v382
        %v511 = vcvt.s32.f32 %v383
        %v512 = vcvt.s32.f32 %v384
        %v513 = vcvt.s32.f32 %v385
        %v514 = vcvt.s32.f32 %v386
        %v515 = vcvt.s32.f32 %v387
        %v516 = vcvt.s32.f32 %v388
        %v517 = vcvt.s32.f32 %v389
        %v518 = vcvt.s32.f32 %v390
        %v519 = vcvt.s32.f32 %v391
        %v520 = vcvt.s32.f32 %v392
        %v521 = vcvt.s32.f32 %v393
        %v522 = vcvt.s32.f32 %v394
        %v523 = vcvt.s32.f32 %v395
        %v524 = vcvt.s32.f32 %v396
        %v525 = vcvt.s32.f32 %v397
        %v526 = vcvt.s32.f32 %v398
        %v527 = vcvt.s32.f32 %v399
        %v528 = vcvt.s32.f32 %v400
        %v529 = vcvt.s32.f32 %v401
        %v530 = vcvt.s32.f32 %v402
        %v531 = vcvt.s32.f32 %v403
        %v532 = vcvt.s32.f32 %v404
        %v533 = vcvt.s32.f32 %v405
        %v534 = vcvt.s32.f32 %v406
        %v535 = vcvt.s32.f32 %v407
        %v536 = vcvt.s32.f32 %v408
        %v537 = vcvt.s32.f32 %v409
        %v538 = vcvt.s32.f32 %v410
        %v539 = vcvt.s32.f32 %v411
        %v540 = vcvt.s32.f32 %v412
        %v541 = vcvt.s32.f32 %v413
        %v542 = vcvt.s32.f32 %v414
        %v543 = vcvt.s32.f32 %v415
        %v544 = vcvt.s32.f32 %v416
        %v545 = vcvt.s32.f32 %v417
        %v546 = vcvt.s32.f32 %v418
        %v547 = vcvt.s32.f32 %v419
        %v548 = vcvt.s32.f32 %v420
        %v549 = vcvt.s32.f32 %v421
        %v550 = vcvt.s32.f32 %v422
        %v551 = vcvt.s32.f32 %v423
        %v552 = vcvt.s32.f32 %v424
        %v553 = vcvt.s32.f32 %v425
        %v554 = vcvt.s32.f32 %v426
        %v555 = vcvt.s32.f32 %v427
        %v556 = vcvt.s32.f32 %v428
        %v557 = vcvt.s32.f32 %v429
        %v558 = vcvt.s32.f32 %v430
        %v559 = vcvt.s32.f32 %v431
        %v560 = vcvt.s32.f32 %v432
        %v561 = vcvt.s32.f32 %v433
        %v562 = vcvt.s32.f32 %v434
        %v563 = vcvt.s32.f32 %v435
        %v564 = vcvt.s32.f32 %v436
        %v565 = vcvt.s32.f32 %v437
        %v566 = vcvt.s32.f32 %v438
        %v567 = vcvt.s32.f32 %v439
        %v568 = vcvt.s32.f32 %v440
        %v569 = vcvt.s32.f32 %v441
        %v570 = vcvt.s32.f32 %v442
        %v571 = vcvt.s32.f32 %v443
        %v572 = vcvt.s32.f32 %v444
        %v573 = vcvt.s32.f32 %v445
        %v574 = vcvt.s32.f32 %v446
        %v575 = vcvt.s32.f32 %v447
        %v576 = vcvt.s32.f32 %v448
        %v577 = vcvt.s32.f32 %v449
        %v578 = vcvt.s32.f32 %v450
        %v579 = vcvt.s32.f32 %v451
        %v580 = vcvt.s32.f32 %v452
        %v581 = vcvt.s32.f32 %v453
        %v582 = vcvt.s32.f32 %v454
        %v583 = vcvt.s32.f32 %v455
        %v584 = vcvt.s32.f32 %v456
        %v585 = vcvt.s32.f32 %v457
        %v586 = vcvt.s32.f32 %v458
        %v587 = vcvt.s32.f32 %v459
        %v588 = vcvt.s32.f32 %v460
        %v589 = vcvt.s32.f32 %v461
        %v590 = vcvt.s32.f32 %v462
        %v591 = vcvt.s32.f32 %v463
        %v592 = vcvt.s32.f32 %v464
        %v593 = vcvt.s32.f32 %v465
        %v594 = vcvt.s32.f32 %v466
        %v595 = vcvt.s32.f32 %v467
        %v596 = vcvt.s32.f32 %v468
        %v597 = vcvt.s32.f32 %v469
        %v598 = vcvt.s32.f32 %v470
        %v599 = vcvt.s32.f32 %v471
        %v600 = vcvt.s32.f32 %v472
        %v601 = vcvt.s32.f32 %v473
        %v602 = vcvt.s32.f32 %v474
        %v603 = vcvt.s32.f32 %v475
        %v604 = vcvt.s32.f32 %v476
        %v605 = vcvt.s32.f32 %v477
        %v606 = vcvt.s32.f32 %v478
        %v607 = vcvt.s32.f32 %v479
        %v608 = vcvt.s32.f32 %v480
        %v609 = vcvt.s32.f32 %v481
        %v610 = vcvt.s32.f32 %v482
        %v611 = vcvt.s32.f32 %v483
        %v612 = vcvt.s32.f32 %v484
        %v613 = vcvt.s32.f32 %v485
        %v614 = vcvt.s32.f32 %v486
        %s615 = sshra.s32 %s179, 7
        %s616 = sand.u32 %s179, 127
        %s617 = smul.addr %s615, 8
        %s618 = scalar_lea.vmem %s2, %s617
        %v619 = vld [vmem:[%s618] sm:$0xff]
        %v620 = vld [vmem:[%s618 + $0x8] sm:$0xff]
        %v621 = vld [vmem:[%s161] sm:$0xff]
        %v622 = vld [vmem:[%s161 + $0x8] sm:$0xff]
        %v623 = vld [vmem:[%s161 + $0x10] sm:$0xff]
        %v624 = vld [vmem:[%s161 + $0x18] sm:$0xff]
        %625 = vmatprep.subr.mxu0 %v488
        %626 = vmatpush1.msra.mxu0 %v487
        %627 = vmatprep.subr.mxu0 %v492
        %628 = vmatpush1.msra.mxu0 %v491
        %629 = vmatprep.subr.mxu0 %v496
        %630 = vmatpush1.msra.mxu0 %v495
        %631 = vmatprep.subr.mxu0 %v500
        %632 = vmatpush1.msra.mxu0 %v499
        %633 = vmatprep.subr.mxu0 %v504
        %634 = vmatpush1.msra.mxu0 %v503
        %635 = vmatprep.subr.mxu0 %v508
        %636 = vmatpush1.msra.mxu0 %v507
        %637 = vmatprep.subr.mxu0 %v512
        %638 = vmatpush1.msra.mxu0 %v511
        %639 = vmatprep.subr.mxu0 %v516
        %640 = vmatpush1.msra.mxu0 %v515
        %641 = vmatprep.subr.mxu0 %v520
        %642 = vmatpush1.msra.mxu0 %v519
        %643 = vmatprep.subr.mxu0 %v524
        %644 = vmatpush1.msra.mxu0 %v523
        %645 = vmatprep.subr.mxu0 %v528
        %646 = vmatpush1.msra.mxu0 %v527
        %647 = vmatprep.subr.mxu0 %v532
        %648 = vmatpush1.msra.mxu0 %v531
        %649 = vmatprep.subr.mxu0 %v536
        %650 = vmatpush1.msra.mxu0 %v535
        %651 = vmatprep.subr.mxu0 %v540
        %652 = vmatpush1.msra.mxu0 %v539
        %653 = vmatprep.subr.mxu0 %v544
        %654 = vmatpush1.msra.mxu0 %v543
        %655 = vmatprep.subr.mxu0 %v548
        %656 = vmatpush1.msra.mxu0 %v547
        %657 = vmatprep.subr.mxu0 %v552
        %658 = vmatpush1.msra.mxu0 %v551
        %659 = vmatprep.subr.mxu0 %v556
        %660 = vmatpush1.msra.mxu0 %v555
        %661 = vmatprep.subr.mxu0 %v560
        %662 = vmatpush1.msra.mxu0 %v559
        %663 = vmatprep.subr.mxu0 %v564
        %664 = vmatpush1.msra.mxu0 %v563
        %665 = vmatprep.subr.mxu0 %v568
        %666 = vmatpush1.msra.mxu0 %v567
        %667 = vmatprep.subr.mxu0 %v572
        %668 = vmatpush1.msra.mxu0 %v571
        %669 = vmatprep.subr.mxu0 %v576
        %670 = vmatpush1.msra.mxu0 %v575
        %671 = vmatprep.subr.mxu0 %v580
        %672 = vmatpush1.msra.mxu0 %v579
        %673 = vmatprep.subr.mxu0 %v584
        %674 = vmatpush1.msra.mxu0 %v583
        %675 = vmatprep.subr.mxu0 %v588
        %676 = vmatpush1.msra.mxu0 %v587
        %677 = vmatprep.subr.mxu0 %v592
        %678 = vmatpush1.msra.mxu0 %v591
        %679 = vmatprep.subr.mxu0 %v596
        %680 = vmatpush1.msra.mxu0 %v595
        %681 = vmatprep.subr.mxu0 %v600
        %682 = vmatpush1.msra.mxu0 %v599
        %683 = vmatprep.subr.mxu0 %v604
        %684 = vmatpush1.msra.mxu0 %v603
        %685 = vmatprep.subr.mxu0 %v608
        %686 = vmatpush1.msra.mxu0 %v607
        %687 = vmatprep.subr.mxu0 %v612
        %688 = vmatpush1.msra.mxu0 %v611
        %689 = vmatprep.mubr.f32.mxu0 %v620
        %690 = vmatmul.mubr.f32.gmra.mrb[0].mxu0 %v619
        %v691 = vpop.f32.mrb[0].mxu0
        %v692 = vadd.f32 0.0, %v691
        %v693 = vpop.f32.mrb[0].mxu0
        %v694 = vadd.f32 0.0, %v693
        %695 = vdwg.mxu0
        %696 = vmatprep.subr.mxu0 %v490
        %697 = vmatpush1.msra.mxu0 %v489
        %698 = vmatprep.subr.mxu0 %v494
        %699 = vmatpush1.msra.mxu0 %v493
        %700 = vmatprep.subr.mxu0 %v498
        %701 = vmatpush1.msra.mxu0 %v497
        %702 = vmatprep.subr.mxu0 %v502
        %703 = vmatpush1.msra.mxu0 %v501
        %704 = vmatprep.subr.mxu0 %v506
        %705 = vmatpush1.msra.mxu0 %v505
        %706 = vmatprep.subr.mxu0 %v510
        %707 = vmatpush1.msra.mxu0 %v509
        %708 = vmatprep.subr.mxu0 %v514
        %709 = vmatpush1.msra.mxu0 %v513
        %710 = vmatprep.subr.mxu0 %v518
        %711 = vmatpush1.msra.mxu0 %v517
        %712 = vmatprep.subr.mxu0 %v522
        %713 = vmatpush1.msra.mxu0 %v521
        %714 = vmatprep.subr.mxu0 %v526
        %715 = vmatpush1.msra.mxu0 %v525
        %716 = vmatprep.subr.mxu0 %v530
        %717 = vmatpush1.msra.mxu0 %v529
        %718 = vmatprep.subr.mxu0 %v534
        %719 = vmatpush1.msra.mxu0 %v533
        %720 = vmatprep.subr.mxu0 %v538
        %721 = vmatpush1.msra.mxu0 %v537
        %722 = vmatprep.subr.mxu0 %v542
        %723 = vmatpush1.msra.mxu0 %v541
        %724 = vmatprep.subr.mxu0 %v546
        %725 = vmatpush1.msra.mxu0 %v545
        %726 = vmatprep.subr.mxu0 %v550
        %727 = vmatpush1.msra.mxu0 %v549
        %728 = vmatprep.subr.mxu0 %v554
        %729 = vmatpush1.msra.mxu0 %v553
        %730 = vmatprep.subr.mxu0 %v558
        %731 = vmatpush1.msra.mxu0 %v557
        %732 = vmatprep.subr.mxu0 %v562
        %733 = vmatpush1.msra.mxu0 %v561
        %734 = vmatprep.subr.mxu0 %v566
        %735 = vmatpush1.msra.mxu0 %v565
        %736 = vmatprep.subr.mxu0 %v570
        %737 = vmatpush1.msra.mxu0 %v569
        %738 = vmatprep.subr.mxu0 %v574
        %739 = vmatpush1.msra.mxu0 %v573
        %740 = vmatprep.subr.mxu0 %v578
        %741 = vmatpush1.msra.mxu0 %v577
        %742 = vmatprep.subr.mxu0 %v582
        %743 = vmatpush1.msra.mxu0 %v581
        %744 = vmatprep.subr.mxu0 %v586
        %745 = vmatpush1.msra.mxu0 %v585
        %746 = vmatprep.subr.mxu0 %v590
        %747 = vmatpush1.msra.mxu0 %v589
        %748 = vmatprep.subr.mxu0 %v594
        %749 = vmatpush1.msra.mxu0 %v593
        %750 = vmatprep.subr.mxu0 %v598
        %751 = vmatpush1.msra.mxu0 %v597
        %752 = vmatprep.subr.mxu0 %v602
        %753 = vmatpush1.msra.mxu0 %v601
        %754 = vmatprep.subr.mxu0 %v606
        %755 = vmatpush1.msra.mxu0 %v605
        %756 = vmatprep.subr.mxu0 %v610
        %757 = vmatpush1.msra.mxu0 %v609
        %758 = vmatprep.subr.mxu0 %v614
        %759 = vmatpush1.msra.mxu0 %v613
        %760 = vmatprep.mubr.f32.mxu0 %v620
        %761 = vmatmul.mubr.f32.gmra.mrb[0].mxu0 %v619
        %v762 = vpop.f32.mrb[0].mxu0
        %v763 = vadd.f32 0.0, %v762
        %v764 = vpop.f32.mrb[0].mxu0
        %v765 = vadd.f32 0.0, %v764
        %766 = vdwg.mxu0
        %v767 = vadd.f32 %v621, %v692
        %v768 = vadd.f32 %v622, %v694
        %v769 = vadd.f32 %v623, %v763
        %v770 = vadd.f32 %v624, %v765
        %771 = vst [vmem:[%s161] sm:$0xff] %v767
        %772 = vst [vmem:[%s161 + $0x8] sm:$0xff] %v768
        %773 = vst [vmem:[%s161 + $0x10] sm:$0xff] %v769
        %774 = vst [vmem:[%s161 + $0x18] sm:$0xff] %v770
      $region36: #{rotate_voxels.1} parent=27 // pred_fallthru
        _
      %s775 = smul.u32 4, %s24
      %p776 = scmp.lt.s32.totalorder %s775, 31
      %s777 = scalar_select %p776, %s775, 31
      %s778 = smul.addr %s777, 8
      %s779 = scalar_lea.vmem %s3, %s778
      // Predicated region
      $region37: #{rotate_voxels.1} parent=27 // pred_check
        %p780 = pneg %p97
      $region38: #{rotate_voxels.1} parent=27 // pred_check_branch
        %782 = sbr.rel (%p780) target = $region40
      $region39: #{rotate_voxels.1} parent=27 // pred_region
        %s783 = smul.u32 4, %s24
      $region40: #{rotate_voxels.1} parent=27 // pred_fallthru
        _
    $region28: #{rotate_voxels.1} parent=5 // pred_fallthru
      _
    %p784 = scmp.le.s32.totalorder 2, %s15
    // Predicated region
    $region41: #{rotate_voxels.1} parent=5 // pred_check
      %p785 = pneg %p784
    $region42: #{rotate_voxels.1} parent=5 // pred_check_branch
      %787 = sbr.rel (%p785) target = $region44
    $region43: #{rotate_voxels.1} parent=5 // pred_region
      %s788 = ssub.s32 %s15, 2
      // Predicated region
      $region45: #{rotate_voxels.1} parent=43 // pred_check
        %p789 = pneg %p103
      $region46: #{rotate_voxels.1} parent=43 // pred_check_branch
        %791 = sbr.rel (%p789) target = $region48
      $region47: #{rotate_voxels.1} parent=43 // pred_region
        %s792 = smul.u32 4, %s26
        %p793 = scmp.lt.s32.totalorder %s792, 31
        %s794 = scalar_select %p793, %s792, 31
        %s795 = smul.addr %s794, 8
        %s796 = scalar_lea.vmem %s3, %s795
      $region48: #{rotate_voxels.1} parent=43 // pred_fallthru
        _
    $region44: #{rotate_voxels.1} parent=5 // pred_fallthru
      _
  $region6: #{rotate_voxels.1} parent=0 // loop_footer
    %s19 = sadd.s32 1, %s15
  $region7: #{rotate_voxels.1} parent=0 // loop_footer_branch
    %14 = sbr.rel target = $region3
  $region8: #{rotate_voxels.1} parent=0 // loop_exit
    _

</llo_original>
